<compile_context>
chip_gen: v6e
topology: v6e:2x2x1
jax: 0.10.0
libtpu: 0.0.40
codegen_flags: <defaults>
</compile_context>

<pallas_src>
import functools

import jax
import jax.numpy as jnp
import numpy as np
from jax.experimental import pallas as pl
from jax.experimental.pallas import tpu as pltpu


# ----------------------------------------------------------------------------
# Fused kernel.
# grid = (ncores, ni, nk):  core-partial axis ("parallel"), batch blocks,
#                           feature (contraction) blocks.
#   x_ref   : (TB, TK)   model-input tile (bf16 or f32)
#   w_ref   : (TK, OUT)  weight tile, OUT = 1 + num_actions
#   b_ref   : (1, OUT)   bias (resident)
#   vsl_ref : (TB, 1)    value labels, f32 (resident across k)
#   psl_ref : (TB, 1)    policy labels, int32 (resident across k)
#   o_ref   : (8, 128)   this core's partial sums, broadcast over sublanes:
#                        lane0 = sum sq-err, lane1 = sum CE, lane2 = #correct
#   acc_ref : (TB, OUT)  f32 matmul accumulator across k
#   se_ref  : (1, OUT)   lane-resolved squared-error partial (lane 0 only);
#                        collapsed across lanes once, at the last step.
# ----------------------------------------------------------------------------
def _fused_loss_kernel(x_ref, w_ref, b_ref, vsl_ref, psl_ref, o_ref,
                       acc_ref, se_ref, *, total_rows):
    c = pl.program_id(0)
    i = pl.program_id(1)
    k = pl.program_id(2)
    ni = pl.num_programs(1)
    nk = pl.num_programs(2)

    @pl.when((i == 0) & (k == 0))
    def _init_core_partials():
        o_ref[...] = jnp.zeros_like(o_ref)
        se_ref[...] = jnp.zeros_like(se_ref)

    @pl.when(k == 0)
    def _zero_matmul_acc():
        acc_ref[...] = jnp.zeros_like(acc_ref)

    # ---- synthetic model forward: accumulate (TB,TK) @ (TK,OUT) on the MXU
    acc_ref[...] += jnp.dot(x_ref[...], w_ref[...],
                            preferred_element_type=jnp.float32)

    @pl.when(k == nk - 1)
    def _epilogue():
        out = acc_ref[...] + b_ref[...].astype(jnp.float32)      # (TB, OUT) f32
        TB, OUT = out.shape

        col = jax.lax.broadcasted_iota(jnp.int32, (TB, OUT), 1)  # lane index
        row0 = (c * ni + i) * TB
        rows = jax.lax.broadcasted_iota(jnp.int32, (TB, 1), 0) + row0
        valid = rows < total_rows                                # ragged mask

        vsl = vsl_ref[...]                                       # (TB,1) f32
        lbl = psl_ref[...]                                       # (TB,1) int32

        # -- value head (lane 0): lane-resolved SSE partial; the lane collapse
        #    is deferred to the final grid step (saves one XLU reduce / step).
        d = out - vsl
        se_ref[...] += jnp.sum(jnp.where(valid & (col == 0), d * d, 0.0),
                               axis=0, keepdims=True)            # (1, OUT)

        # -- policy head (lanes 1..OUT-1): CE sum + correct count -------------
        # NOTE: requires OUT >= 2; OUT == 1 would make the masked max -inf.
        logits = jnp.where(col >= 1, out, -jnp.inf)
        m = jnp.max(logits, axis=1, keepdims=True)               # (TB,1)
        z = jnp.sum(jnp.exp(logits - m), axis=1, keepdims=True)  # masked->exp=0
        lse = m + jnp.log(z)
        picked = jnp.sum(jnp.where(col == lbl + 1, out, 0.0),
                         axis=1, keepdims=True)                  # label logit
        ce = jnp.sum(jnp.where(valid, lse - picked, 0.0),
                     axis=0, keepdims=True)                      # (1,1)
        # accuracy shortcut: label logit equals the row max  (exact ties with
        # the label count as correct; torch argmax tie-break differs only on
        # exact f32 ties, which do not occur for continuous random logits).
        corr = jnp.sum(jnp.where(valid & (picked == m), 1.0, 0.0),
                       axis=0, keepdims=True)                    # (1,1)

        lane = jax.lax.broadcasted_iota(jnp.int32, o_ref.shape, 1)
        o_ref[...] += jnp.where(lane == 1, ce,
                                jnp.where(lane == 2, corr, 0.0))

    @pl.when((i == ni - 1) & (k == nk - 1))
    def _finalize_core():
        # single cross-lane collapse of the SSE partial, once per core
        se_tot = jnp.sum(se_ref[...], axis=1, keepdims=True)     # (1,1)
        lane = jax.lax.broadcasted_iota(jnp.int32, o_ref.shape, 1)
        o_ref[...] += jnp.where(lane == 0, se_tot, 0.0)


# ----------------------------------------------------------------------------
# Tile-size / VMEM heuristics (generation-aware)
# ----------------------------------------------------------------------------
def _pick_feature_block(F, cap=4096):
    """Largest K tile that divides F (no garbage in the contraction) <= cap."""
    if F <= cap:
        return F
    t = (cap // 128) * 128
    while t >= 128:
        if F % t == 0:
            return t
        t -= 128
    return F   # no nice divisor: keep K whole, batch block shrinks instead


def _pick_batch_block(B, tk, in_bytes, budget_bytes, sublane):
    """Largest batch block whose double-buffered x tile fits the budget."""
    cap = budget_bytes // (2 * in_bytes * max(tk, 1))
    cap = max(sublane, (cap // sublane) * sublane)
    cap = min(cap, 1024)          # beyond ~1K rows the epilogue temps dominate
    if B <= cap:
        return B                  # full batch dim is always a legal block
    return cap                    # need not divide B: ragged last block masked


def _vmem_budgets():
    """(x double-buffer budget, vmem_limit cap) per chip generation."""
    try:
        vmem_cap = int(pltpu.get_tpu_info().vmem_capacity_bytes)
    except Exception:
        vmem_cap = 64 << 20                      # conservative (v7x-safe)
    if vmem_cap >= (96 << 20):                   # v5e / v6e: 128 MiB physical
        return 44 << 20, 60 << 20
    return 22 << 20, 40 << 20                    # v7x: 64 MiB per TensorCore


# ----------------------------------------------------------------------------
# Wrapper replicating Loss.forward
# ----------------------------------------------------------------------------
def loss_forward(histories, lengths, rnn_states, resets, vs_label, ps_label,
                 W, b, *, use_bf16_inputs=True, block_b=None, block_k=None):
    del lengths, rnn_states, resets   # TODO(synk): unused by synthetic model
    B = histories.shape[0]
    F = int(np.prod(histories.shape[1:]))
    OUT = W.shape[1]                  # 1 + num_actions
    if OUT < 2:
        raise ValueError("need at least one policy class (OUT >= 2)")

    x = histories.reshape(B, F)
    if use_bf16_inputs:
        # bf16 MXU inputs, f32 accumulation: halves the dominant x DMA stream.
        # (In production, feed bf16 activations/weights directly so this cast
        #  does not materialize an extra HBM copy.)
        x = x.astype(jnp.bfloat16)
        Wm = W.astype(jnp.bfloat16)
        sublane = 16
    else:
        x = x.astype(jnp.float32)
        Wm = W.astype(jnp.float32)
        sublane = 8
    in_bytes = jnp.dtype(x.dtype).itemsize

    x_budget, vmem_cap_limit = _vmem_budgets()

    tk = block_k if block_k is not None else _pick_feature_block(F)
    nk = (F + tk - 1) // tk
    tb = block_b if block_b is not None else _pick_batch_block(
        B, tk, in_bytes, x_budget, sublane)

    nb = (B + tb - 1) // tb                      # batch blocks (last may be ragged)
    ncores = 2 if (nb >= 2 and nb % 2 == 0) else 1   # v7x dual-TC split; serial
    ni = nb // ncores                                # (and harmless) on v5e/v6e

    # VMEM request derived from the actual tile bytes (+ lane-padded labels,
    # matmul accumulator, ~a dozen (tb,128) f32 epilogue temporaries).
    x_tile = 2 * in_bytes * tb * max(tk, 128)            # double-buffered x
    w_tile = 2 * in_bytes * max(tk, 8) * 128             # W, OUT lanes padded
    lbl_tile = 4 * tb * 512                              # 2 arrays x 2 buffers
    temps = 14 * tb * 512                                # acc scratch + epilogue
    vmem_need = x_tile + w_tile + lbl_tile + temps + (2 << 20)
    vmem_limit = int(min(max(vmem_need, 8 << 20), vmem_cap_limit))

    kernel = functools.partial(_fused_loss_kernel, total_rows=B)

    out = pl.pallas_call(
        kernel,
        out_shape=jax.ShapeDtypeStruct((ncores * 8, 128), jnp.float32),
        grid_spec=pltpu.PrefetchScalarGridSpec(
            num_scalar_prefetch=0,
            grid=(ncores, ni, nk),
            in_specs=[
                pl.BlockSpec((tb, tk), lambda c, i, k: (c * ni + i, k)),   # x
                pl.BlockSpec((tk, OUT), lambda c, i, k: (k, 0)),           # W
                pl.BlockSpec((1, OUT), lambda c, i, k: (0, 0)),            # b
                pl.BlockSpec((tb, 1), lambda c, i, k: (c * ni + i, 0)),    # vs
                pl.BlockSpec((tb, 1), lambda c, i, k: (c * ni + i, 0)),    # ps
            ],
            out_specs=pl.BlockSpec((8, 128), lambda c, i, k: (c, 0)),
            scratch_shapes=[
                pltpu.VMEM((tb, OUT), jnp.float32),   # matmul accumulator
                pltpu.VMEM((1, OUT), jnp.float32),    # lane-resolved SSE partial
            ],
        ),
        compiler_params=pltpu.CompilerParams(
            # core axis "parallel" (uses both v7x TensorCores); batch and
            # feature axes are loss/contraction reductions -> "arbitrary".
            dimension_semantics=("parallel", "arbitrary", "arbitrary"),
            vmem_limit_bytes=vmem_limit,
        ),
    )(
        x,
        Wm,
        jnp.asarray(b, jnp.float32).reshape(1, OUT),
        vs_label.reshape(-1, 1).astype(jnp.float32),
        ps_label.reshape(-1, 1).astype(jnp.int32),
    )

    # combine per-core partials -> [MSE, mean CE, accuracy]
    partials = out.reshape(ncores, 8, 128)[:, 0, :3]     # sublanes are copies
    return (jnp.sum(partials, axis=0) / jnp.float32(B)).reshape(1, 3)


# ----------------------------------------------------------------------------
# Pure-JAX reference for the correctness checks
# ----------------------------------------------------------------------------
def _reference(histories, vs_label, ps_label, W, b, *, bf16_inputs):
    B = histories.shape[0]
    x = histories.reshape(B, -1)
    if bf16_inputs:
        x = x.astype(jnp.bfloat16).astype(jnp.float32)
        Wm = W.astype(jnp.bfloat16).astype(jnp.float32)
    else:
        x = x.astype(jnp.float32)
        Wm = W.astype(jnp.float32)
    out = x @ Wm + jnp.asarray(b, jnp.float32).reshape(1, -1)
    vs, ps = out[:, :1], out[:, 1:]
    mse = jnp.mean((vs - vs_label.reshape(-1, 1)) ** 2)
    logz = jax.nn.logsumexp(ps, axis=1)
    ce = jnp.mean(logz - ps[jnp.arange(B), ps_label])
    acc = jnp.mean((jnp.argmax(ps, axis=1) == ps_label).astype(jnp.float32))
    return jnp.stack([mse, ce, acc]).reshape(1, -1)


if __name__ == "__main__":
    key = jax.random.PRNGKey(0)
    k1, k2, k3, k4, k5, k6, k7, k8 = jax.random.split(key, 8)

    # small shapes consistent with the forward: histories is 5-D (B, T, C, H, W)
    B, T, C, H, Wd = 8, 4, 2, 8, 8
    F = T * C * H * Wd            # 512
    A = 16                        # number of policy classes
    HIDDEN = 32                   # rnn state width (unused by synthetic model)

    histories = jax.random.normal(k1, (B, T, C, H, Wd), dtype=jnp.float32)
    lengths = jnp.full((B,), T, dtype=jnp.int32)
    rnn_states = jnp.zeros((B, HIDDEN), dtype=jnp.float32)
    resets = jnp.zeros((B,), dtype=jnp.float32)
    vs_label = jax.random.normal(k2, (B,), dtype=jnp.float32)
    ps_label = jax.random.randint(k3, (B,), 0, A, dtype=jnp.int32)

    # deterministic synthetic model parameters: (F, 1+A) weight, (1, 1+A) bias
    Wp = jax.random.normal(k4, (F, 1 + A), dtype=jnp.float32) * 0.05
    bp = jax.random.normal(k5, (1, 1 + A), dtype=jnp.float32) * 0.01

    # --- check 1: f32 path, tight tolerance against f32 reference -----------
    res32 = jax.block_until_ready(
        loss_forward(histories, lengths, rnn_states, resets, vs_label,
                     ps_label, Wp, bp, use_bf16_inputs=False))
    ref32 = jax.block_until_ready(
        _reference(histories, vs_label, ps_label, Wp, bp, bf16_inputs=False))
    np.testing.assert_allclose(np.asarray(res32), np.asarray(ref32),
                               rtol=1e-4, atol=1e-4)
    assert res32.shape == (1, 3)

    # --- check 2: default bf16-MXU path vs bf16-cast reference --------------
    resbf = jax.block_until_ready(
        loss_forward(histories, lengths, rnn_states, resets, vs_label,
                     ps_label, Wp, bp))
    refbf = jax.block_until_ready(
        _reference(histories, vs_label, ps_label, Wp, bp, bf16_inputs=True))
    np.testing.assert_allclose(np.asarray(resbf), np.asarray(refbf),
                               rtol=1e-3, atol=1e-3)
    assert resbf.shape == (1, 3)

    # --- check 3: ragged batch + K-tiling + multi-block / 2-partial grid ----
    B2 = 28                       # not a multiple of the 8-row block: ragged
    histories2 = jax.random.normal(k6, (B2, T, C, H, Wd), dtype=jnp.float32)
    vs_label2 = jax.random.normal(k7, (B2,), dtype=jnp.float32)
    ps_label2 = jax.random.randint(k8, (B2,), 0, A, dtype=jnp.int32)
    lengths2 = jnp.full((B2,), T, dtype=jnp.int32)
    rnn_states2 = jnp.zeros((B2, HIDDEN), dtype=jnp.float32)
    resets2 = jnp.zeros((B2,), dtype=jnp.float32)

    res2 = jax.block_until_ready(
        loss_forward(histories2, lengths2, rnn_states2, resets2, vs_label2,
                     ps_label2, Wp, bp, use_bf16_inputs=False,
                     block_b=8, block_k=128))
    ref2 = jax.block_until_ready(
        _reference(histories2, vs_label2, ps_label2, Wp, bp,
                   bf16_inputs=False))
    np.testing.assert_allclose(np.asarray(res2), np.asarray(ref2),
                               rtol=1e-4, atol=1e-4)

    print("KERNEL_OK")
</pallas_src>

<mosaic_0001>
module attributes {stable_mosaic.version = 11 : i64} {
  func.func @_fused_loss_kernel(%arg0: i32, %arg1: i32, %arg2: i32, %arg3: memref<8x512xf32, #tpu.memory_space<vmem>>, %arg4: memref<512x17xf32, #tpu.memory_space<vmem>>, %arg5: memref<1x17xf32, #tpu.memory_space<vmem>>, %arg6: memref<8x1xf32, #tpu.memory_space<vmem>>, %arg7: memref<8x1xi32, #tpu.memory_space<vmem>>, %arg8: memref<8x128xf32, #tpu.memory_space<vmem>>, %arg9: memref<8x17xf32, #tpu.memory_space<vmem>>, %arg10: memref<1x17xf32, #tpu.memory_space<vmem>>) attributes {dimension_semantics = [#tpu.dimension_semantics<parallel>, #tpu.dimension_semantics<arbitrary>, #tpu.dimension_semantics<arbitrary>], iteration_bounds = array<i64: 1, 1, 1>, scalar_prefetch = 0 : i64, scratch_operands = 2 : i64, tpu.core_type = #tpu.core_type<tc>, window_params = [{transform_indices = @transform_0, window_bounds = array<i64: 8, 512>}, {transform_indices = @transform_1, window_bounds = array<i64: 512, 17>}, {pipeline_mode = #tpu.pipeline_mode<synchronous>, transform_indices = @transform_2, window_bounds = array<i64: 1, 17>}, {transform_indices = @transform_3, window_bounds = array<i64: 8, 1>}, {transform_indices = @transform_4, window_bounds = array<i64: 8, 1>}, {transform_indices = @transform_5, window_bounds = array<i64: 8, 128>}]} {
    %c0_i32 = arith.constant 0 : i32
    %0 = arith.cmpi eq, %arg1, %c0_i32 : i32
    %c0_i32_0 = arith.constant 0 : i32
    %1 = arith.cmpi eq, %arg2, %c0_i32_0 : i32
    %2 = arith.andi %0, %1 : i1
    %3 = arith.extui %2 : i1 to i32
    %c0_i32_1 = arith.constant 0 : i32
    %4 = arith.cmpi ne, %3, %c0_i32_1 : i32
    scf.if %4 {
      %cst_16 = arith.constant 0.000000e+00 : f32
      %22 = vector.broadcast %cst_16 : f32 to vector<8x128xf32>
      %c0_17 = arith.constant 0 : index
      %c0_18 = arith.constant 0 : index
      %23 = vector.load %arg8[%c0_17, %c0_18] : memref<8x128xf32, #tpu.memory_space<vmem>>, vector<8x128xf32>
      tpu.vector_store %arg8[%c0_17, %c0_18], %22 {strides = array<i32>} : memref<8x128xf32, #tpu.memory_space<vmem>>, vector<8x128xf32>,
      %cst_19 = arith.constant 0.000000e+00 : f32
      %24 = vector.broadcast %cst_19 : f32 to vector<1x17xf32>
      %c0_20 = arith.constant 0 : index
      %c0_21 = arith.constant 0 : index
      %25 = vector.load %arg10[%c0_20, %c0_21] : memref<1x17xf32, #tpu.memory_space<vmem>>, vector<1x17xf32>
      tpu.vector_store %arg10[%c0_20, %c0_21], %24 {strides = array<i32>} : memref<1x17xf32, #tpu.memory_space<vmem>>, vector<1x17xf32>,
    } else {
    }
    %c0_i32_2 = arith.constant 0 : i32
    %5 = arith.cmpi eq, %arg2, %c0_i32_2 : i32
    %6 = arith.extui %5 : i1 to i32
    %c0_i32_3 = arith.constant 0 : i32
    %7 = arith.cmpi ne, %6, %c0_i32_3 : i32
    scf.if %7 {
      %cst_16 = arith.constant 0.000000e+00 : f32
      %22 = vector.broadcast %cst_16 : f32 to vector<8x17xf32>
      %c0_17 = arith.constant 0 : index
      %c0_18 = arith.constant 0 : index
      %23 = vector.load %arg9[%c0_17, %c0_18] : memref<8x17xf32, #tpu.memory_space<vmem>>, vector<8x17xf32>
      tpu.vector_store %arg9[%c0_17, %c0_18], %22 {strides = array<i32>} : memref<8x17xf32, #tpu.memory_space<vmem>>, vector<8x17xf32>,
    } else {
    }
    %c0 = arith.constant 0 : index
    %c0_4 = arith.constant 0 : index
    %8 = vector.load %arg9[%c0, %c0_4] : memref<8x17xf32, #tpu.memory_space<vmem>>, vector<8x17xf32>
    %c0_5 = arith.constant 0 : index
    %c0_6 = arith.constant 0 : index
    %9 = vector.load %arg3[%c0_5, %c0_6] : memref<8x512xf32, #tpu.memory_space<vmem>>, vector<8x512xf32>
    %c0_7 = arith.constant 0 : index
    %c0_8 = arith.constant 0 : index
    %10 = vector.load %arg4[%c0_7, %c0_8] : memref<512x17xf32, #tpu.memory_space<vmem>>, vector<512x17xf32>
    %cst = arith.constant dense<0.000000e+00> : vector<8x17xf32>
    %11 = tpu.matmul %9, %10, %cst {dimension_numbers = #tpu.dot_dimension_numbers<[1], [0], [0], [1], [0, 0, 1, 1], [], []>} : vector<8x512xf32>, vector<512x17xf32>, vector<8x17xf32> -> vector<8x17xf32>
    %12 = arith.addf %8, %11 : vector<8x17xf32>
    %c0_9 = arith.constant 0 : index
    %c0_10 = arith.constant 0 : index
    %13 = vector.load %arg9[%c0_9, %c0_10] : memref<8x17xf32, #tpu.memory_space<vmem>>, vector<8x17xf32>
    tpu.vector_store %arg9[%c0_9, %c0_10], %12 {strides = array<i32>} : memref<8x17xf32, #tpu.memory_space<vmem>>, vector<8x17xf32>,
    %c0_i32_11 = arith.constant 0 : i32
    %14 = arith.cmpi eq, %arg2, %c0_i32_11 : i32
    %15 = arith.extui %14 : i1 to i32
    %c0_i32_12 = arith.constant 0 : i32
    %16 = arith.cmpi ne, %15, %c0_i32_12 : i32
    scf.if %16 {
      %c0_16 = arith.constant 0 : index
      %c0_17 = arith.constant 0 : index
      %22 = vector.load %arg9[%c0_16, %c0_17] : memref<8x17xf32, #tpu.memory_space<vmem>>, vector<8x17xf32>
      %c0_18 = arith.constant 0 : index
      %c0_19 = arith.constant 0 : index
      %23 = vector.load %arg5[%c0_18, %c0_19] : memref<1x17xf32, #tpu.memory_space<vmem>>, vector<1x17xf32>
      %24 = vector.broadcast %23 : vector<1x17xf32> to vector<8x17xf32>
      %25 = arith.addf %22, %24 : vector<8x17xf32>
      %26 = tpu.iota {dimensions = array<i32: 1>} : vector<8x17xi32>
      %c1_i32 = arith.constant 1 : i32
      %27 = arith.muli %arg0, %c1_i32 : i32
      %28 = arith.addi %27, %arg1 : i32
      %c8_i32 = arith.constant 8 : i32
      %29 = arith.muli %28, %c8_i32 : i32
      %30 = tpu.iota {dimensions = array<i32: 0>} : vector<8x1xi32>
      %31 = vector.broadcast %29 : i32 to vector<8x1xi32>
      %32 = arith.addi %30, %31 : vector<8x1xi32>
      %c8_i32_20 = arith.constant 8 : i32
      %33 = vector.broadcast %c8_i32_20 : i32 to vector<8x1xi32>
      %34 = arith.cmpi slt, %32, %33 : vector<8x1xi32>
      %c0_21 = arith.constant 0 : index
      %c0_22 = arith.constant 0 : index
      %35 = vector.load %arg6[%c0_21, %c0_22] : memref<8x1xf32, #tpu.memory_space<vmem>>, vector<8x1xf32>
      %c0_23 = arith.constant 0 : index
      %c0_24 = arith.constant 0 : index
      %36 = vector.load %arg7[%c0_23, %c0_24] : memref<8x1xi32, #tpu.memory_space<vmem>>, vector<8x1xi32>
      %37 = vector.broadcast %35 : vector<8x1xf32> to vector<8x17xf32>
      %38 = arith.subf %25, %37 : vector<8x17xf32>
      %c0_25 = arith.constant 0 : index
      %c0_26 = arith.constant 0 : index
      %39 = vector.load %arg10[%c0_25, %c0_26] : memref<1x17xf32, #tpu.memory_space<vmem>>, vector<1x17xf32>
      %c0_i32_27 = arith.constant 0 : i32
      %40 = vector.broadcast %c0_i32_27 : i32 to vector<8x17xi32>
      %41 = arith.cmpi eq, %26, %40 : vector<8x17xi32>
      %42 = vector.broadcast %34 : vector<8x1xi1> to vector<8x17xi1>
      %43 = arith.andi %42, %41 : vector<8x17xi1>
      %44 = arith.mulf %38, %38 : vector<8x17xf32>
      %cst_28 = arith.constant 0.000000e+00 : f32
      %45 = vector.broadcast %cst_28 : f32 to vector<8x17xf32>
      %46 = arith.select %43, %44, %45 : vector<8x17xi1>, vector<8x17xf32>
      %cst_29 = arith.constant dense<0.000000e+00> : vector<17xf32>
      %47 = vector.multi_reduction <add>, %46, %cst_29 [0] : vector<8x17xf32> to vector<17xf32>
      %48 = vector.shape_cast %47 : vector<17xf32> to vector<1x17xf32>
      %49 = arith.addf %39, %48 : vector<1x17xf32>
      %c0_30 = arith.constant 0 : index
      %c0_31 = arith.constant 0 : index
      %50 = vector.load %arg10[%c0_30, %c0_31] : memref<1x17xf32, #tpu.memory_space<vmem>>, vector<1x17xf32>
      tpu.vector_store %arg10[%c0_30, %c0_31], %49 {strides = array<i32>} : memref<1x17xf32, #tpu.memory_space<vmem>>, vector<1x17xf32>,
      %c1_i32_32 = arith.constant 1 : i32
      %51 = vector.broadcast %c1_i32_32 : i32 to vector<8x17xi32>
      %52 = arith.cmpi sge, %26, %51 : vector<8x17xi32>
      %cst_33 = arith.constant 0xFF800000 : f32
      %53 = vector.broadcast %cst_33 : f32 to vector<8x17xf32>
      %54 = arith.select %52, %25, %53 : vector<8x17xi1>, vector<8x17xf32>
      %cst_34 = arith.constant dense<0xFF800000> : vector<8xf32>
      %55 = vector.multi_reduction <maximumf>, %54, %cst_34 [1] : vector<8x17xf32> to vector<8xf32>
      %56 = vector.shape_cast %55 : vector<8xf32> to vector<8x1xf32>
      %57 = vector.broadcast %56 : vector<8x1xf32> to vector<8x17xf32>
      %58 = arith.subf %54, %57 : vector<8x17xf32>
      %59 = math.exp %58 : vector<8x17xf32>
      %cst_35 = arith.constant dense<0.000000e+00> : vector<8xf32>
      %60 = vector.multi_reduction <add>, %59, %cst_35 [1] : vector<8x17xf32> to vector<8xf32>
      %61 = vector.shape_cast %60 : vector<8xf32> to vector<8x1xf32>
      %62 = math.log %61 : vector<8x1xf32>
      %63 = arith.addf %56, %62 : vector<8x1xf32>
      %c1_i32_36 = arith.constant 1 : i32
      %64 = vector.broadcast %c1_i32_36 : i32 to vector<8x1xi32>
      %65 = arith.addi %36, %64 : vector<8x1xi32>
      %66 = vector.broadcast %65 : vector<8x1xi32> to vector<8x17xi32>
      %67 = arith.cmpi eq, %26, %66 : vector<8x17xi32>
      %cst_37 = arith.constant 0.000000e+00 : f32
      %68 = vector.broadcast %cst_37 : f32 to vector<8x17xf32>
      %69 = arith.select %67, %25, %68 : vector<8x17xi1>, vector<8x17xf32>
      %cst_38 = arith.constant dense<0.000000e+00> : vector<8xf32>
      %70 = vector.multi_reduction <add>, %69, %cst_38 [1] : vector<8x17xf32> to vector<8xf32>
      %71 = vector.shape_cast %70 : vector<8xf32> to vector<8x1xf32>
      %72 = arith.subf %63, %71 : vector<8x1xf32>
      %cst_39 = arith.constant 0.000000e+00 : f32
      %73 = vector.broadcast %cst_39 : f32 to vector<8x1xf32>
      %74 = arith.select %34, %72, %73 : vector<8x1xi1>, vector<8x1xf32>
      %cst_40 = arith.constant dense<0.000000e+00> : vector<1xf32>
      %75 = vector.multi_reduction <add>, %74, %cst_40 [0] : vector<8x1xf32> to vector<1xf32>
      %76 = vector.shape_cast %75 : vector<1xf32> to vector<1x1xf32>
      %77 = arith.cmpf oeq, %71, %56 : vector<8x1xf32>
      %78 = arith.andi %34, %77 : vector<8x1xi1>
      %cst_41 = arith.constant 1.000000e+00 : f32
      %cst_42 = arith.constant 0.000000e+00 : f32
      %79 = vector.broadcast %cst_41 : f32 to vector<8x1xf32>
      %80 = vector.broadcast %cst_42 : f32 to vector<8x1xf32>
      %81 = arith.select %78, %79, %80 : vector<8x1xi1>, vector<8x1xf32>
      %cst_43 = arith.constant dense<0.000000e+00> : vector<1xf32>
      %82 = vector.multi_reduction <add>, %81, %cst_43 [0] : vector<8x1xf32> to vector<1xf32>
      %83 = vector.shape_cast %82 : vector<1xf32> to vector<1x1xf32>
      %84 = tpu.iota {dimensions = array<i32: 1>} : vector<8x128xi32>
      %c0_44 = arith.constant 0 : index
      %c0_45 = arith.constant 0 : index
      %85 = vector.load %arg8[%c0_44, %c0_45] : memref<8x128xf32, #tpu.memory_space<vmem>>, vector<8x128xf32>
      %c1_i32_46 = arith.constant 1 : i32
      %86 = vector.broadcast %c1_i32_46 : i32 to vector<8x128xi32>
      %87 = arith.cmpi eq, %84, %86 : vector<8x128xi32>
      %c2_i32 = arith.constant 2 : i32
      %88 = vector.broadcast %c2_i32 : i32 to vector<8x128xi32>
      %89 = arith.cmpi eq, %84, %88 : vector<8x128xi32>
      %cst_47 = arith.constant 0.000000e+00 : f32
      %90 = vector.shape_cast %83 : vector<1x1xf32> to vector<1x1xf32>
      %91 = vector.broadcast %90 : vector<1x1xf32> to vector<8x128xf32>
      %92 = vector.broadcast %cst_47 : f32 to vector<8x128xf32>
      %93 = arith.select %89, %91, %92 : vector<8x128xi1>, vector<8x128xf32>
      %94 = vector.shape_cast %76 : vector<1x1xf32> to vector<1x1xf32>
      %95 = vector.broadcast %94 : vector<1x1xf32> to vector<8x128xf32>
      %96 = arith.select %87, %95, %93 : vector<8x128xi1>, vector<8x128xf32>
      %97 = arith.addf %85, %96 : vector<8x128xf32>
      %c0_48 = arith.constant 0 : index
      %c0_49 = arith.constant 0 : index
      %98 = vector.load %arg8[%c0_48, %c0_49] : memref<8x128xf32, #tpu.memory_space<vmem>>, vector<8x128xf32>
      tpu.vector_store %arg8[%c0_48, %c0_49], %97 {strides = array<i32>} : memref<8x128xf32, #tpu.memory_space<vmem>>, vector<8x128xf32>,
    } else {
    }
    %c0_i32_13 = arith.constant 0 : i32
    %17 = arith.cmpi eq, %arg1, %c0_i32_13 : i32
    %c0_i32_14 = arith.constant 0 : i32
    %18 = arith.cmpi eq, %arg2, %c0_i32_14 : i32
    %19 = arith.andi %17, %18 : i1
    %20 = arith.extui %19 : i1 to i32
    %c0_i32_15 = arith.constant 0 : i32
    %21 = arith.cmpi ne, %20, %c0_i32_15 : i32
    scf.if %21 {
      %c0_16 = arith.constant 0 : index
      %c0_17 = arith.constant 0 : index
      %22 = vector.load %arg10[%c0_16, %c0_17] : memref<1x17xf32, #tpu.memory_space<vmem>>, vector<1x17xf32>
      %cst_18 = arith.constant dense<0.000000e+00> : vector<1xf32>
      %23 = vector.multi_reduction <add>, %22, %cst_18 [1] : vector<1x17xf32> to vector<1xf32>
      %24 = vector.shape_cast %23 : vector<1xf32> to vector<1x1xf32>
      %25 = tpu.iota {dimensions = array<i32: 1>} : vector<8x128xi32>
      %c0_19 = arith.constant 0 : index
      %c0_20 = arith.constant 0 : index
      %26 = vector.load %arg8[%c0_19, %c0_20] : memref<8x128xf32, #tpu.memory_space<vmem>>, vector<8x128xf32>
      %c0_i32_21 = arith.constant 0 : i32
      %27 = vector.broadcast %c0_i32_21 : i32 to vector<8x128xi32>
      %28 = arith.cmpi eq, %25, %27 : vector<8x128xi32>
      %cst_22 = arith.constant 0.000000e+00 : f32
      %29 = vector.shape_cast %24 : vector<1x1xf32> to vector<1x1xf32>
      %30 = vector.broadcast %29 : vector<1x1xf32> to vector<8x128xf32>
      %31 = vector.broadcast %cst_22 : f32 to vector<8x128xf32>
      %32 = arith.select %28, %30, %31 : vector<8x128xi1>, vector<8x128xf32>
      %33 = arith.addf %26, %32 : vector<8x128xf32>
      %c0_23 = arith.constant 0 : index
      %c0_24 = arith.constant 0 : index
      %34 = vector.load %arg8[%c0_23, %c0_24] : memref<8x128xf32, #tpu.memory_space<vmem>>, vector<8x128xf32>
      tpu.vector_store %arg8[%c0_23, %c0_24], %33 {strides = array<i32>} : memref<8x128xf32, #tpu.memory_space<vmem>>, vector<8x128xf32>,
    } else {
    }
    return
  }
  func.func @transform_0(%arg0: i32, %arg1: i32, %arg2: i32) -> (i32, i32) {
    %c1_i32 = arith.constant 1 : i32
    %0 = arith.muli %arg0, %c1_i32 : i32
    %1 = arith.addi %0, %arg1 : i32
    %c0_i32 = arith.constant 0 : i32
    return %1, %arg2 : i32, i32
  }
  func.func @transform_1(%arg0: i32, %arg1: i32, %arg2: i32) -> (i32, i32) {
    %c0_i32 = arith.constant 0 : i32
    %c0_i32_0 = arith.constant 0 : i32
    return %arg2, %c0_i32 : i32, i32
  }
  func.func @transform_2(%arg0: i32, %arg1: i32, %arg2: i32) -> (i32, i32) {
    %c0_i32 = arith.constant 0 : i32
    %c0_i32_0 = arith.constant 0 : i32
    %c0_i32_1 = arith.constant 0 : i32
    return %c0_i32, %c0_i32_0 : i32, i32
  }
  func.func @transform_3(%arg0: i32, %arg1: i32, %arg2: i32) -> (i32, i32) {
    %c1_i32 = arith.constant 1 : i32
    %0 = arith.muli %arg0, %c1_i32 : i32
    %1 = arith.addi %0, %arg1 : i32
    %c0_i32 = arith.constant 0 : i32
    %c0_i32_0 = arith.constant 0 : i32
    return %1, %c0_i32 : i32, i32
  }
  func.func @transform_4(%arg0: i32, %arg1: i32, %arg2: i32) -> (i32, i32) {
    %c1_i32 = arith.constant 1 : i32
    %0 = arith.muli %arg0, %c1_i32 : i32
    %1 = arith.addi %0, %arg1 : i32
    %c0_i32 = arith.constant 0 : i32
    %c0_i32_0 = arith.constant 0 : i32
    return %1, %c0_i32 : i32, i32
  }
  func.func @transform_5(%arg0: i32, %arg1: i32, %arg2: i32) -> (i32, i32) {
    %c0_i32 = arith.constant 0 : i32
    %c0_i32_0 = arith.constant 0 : i32
    return %arg0, %c0_i32 : i32, i32
  }
}

</mosaic_0001>

<llo_original>
// kernel: tpu_custom_call.1
$region0: #{tpu_custom_call.1}
  #allocation0 [shape = 'u32[]', space=smem, size = 0x4, offset = 0x4, fixed_abs, tag = 'smem constant byte address 0x4 - core index']
  #allocation1 [shape = 'u32[144,128]{1,0:T(1,128)}', space=vmem, size = 0x12000, scoped, tag = 'internal scratch']
  #allocation2 [shape = 'f32[8,17]{1,0:T(8,128)}', space=vmem, size = 0x1000, scoped, tag = 'scratch operand']
  #allocation3 [shape = 'f32[1,17]{1,0:T(1,128)}', space=vmem, size = 0x200, scoped, tag = 'scratch operand']
  %s0 = inlined_call_operand.vmem [shape: f32[8,512], index: 0, kind: input, shape index: {}]
  %s1 = inlined_call_operand.vmem [shape: f32[512,17], index: 1, kind: input, shape index: {}]
  %s2 = inlined_call_operand.vmem [shape: f32[1,17], index: 2, kind: input, shape index: {}]
  %s3 = inlined_call_operand.vmem [shape: f32[8,1], index: 3, kind: input, shape index: {}]
  %s4 = inlined_call_operand.vmem [shape: s32[8,1], index: 4, kind: input, shape index: {}]
  %s5 = inlined_call_operand.hbm [shape: f32[8,128], index: 5, kind: output, shape index: {}]
  %s6 = sld [smem:[#allocation0]]
  $region46: #{tpu_custom_call.1} parent=0
    _
  %s8 = ssub.s32 1, %s6
  %s9 = scalar_select 0, %s8, %s6
  $region1: #{tpu_custom_call.1} parent=0
    #allocation4 [shape = 'u8[4096]{0}', space=vmem, size = 0x1000, scoped, tag = 'output window, operand 0, single buffered']
    #allocation5 [shape = 's32[1]{0}', space=sflag, size = 0x4, scoped, tag = 'scoped memory for tpu_custom_call.1']
    %10 = vsyncpa [#allocation5], 0
    // Predicated region
    $region2: #{tpu_custom_call.1} parent=1 // pred_check
      _
    $region3: #{tpu_custom_call.1} parent=1 // pred_check_branch
      %12 = sbr.rel (0) target = $region5
    $region4: #{tpu_custom_call.1} parent=1 // pred_region
      %s13 = sadd.s32 0, 0
      %p14 = scmp.lt.s32.totalorder %s13, 0
      %s15 = scalar_select %p14, %s13, 0
      %s16 = smul.addr %s15, 4
      %s17 = smul.addr %s16, 8
      %s18 = scalar_lea.vmem %s0, %s17
      %s19 = sadd.s32 0, 0
    $region5: #{tpu_custom_call.1} parent=1 // pred_fallthru
      _
    // Predicated region
    $region6: #{tpu_custom_call.1} parent=1 // pred_check
      _
    $region7: #{tpu_custom_call.1} parent=1 // pred_check_branch
      %21 = sbr.rel (0) target = $region9
    $region8: #{tpu_custom_call.1} parent=1 // pred_region
      _
    $region9: #{tpu_custom_call.1} parent=1 // pred_fallthru
      _
    // Predicated region
    $region10: #{tpu_custom_call.1} parent=1 // pred_check
      _
    $region11: #{tpu_custom_call.1} parent=1 // pred_check_branch
      %23 = sbr.rel (0) target = $region13
    $region12: #{tpu_custom_call.1} parent=1 // pred_region
      _
    $region13: #{tpu_custom_call.1} parent=1 // pred_fallthru
      _
    // Predicated region
    $region14: #{tpu_custom_call.1} parent=1 // pred_check
      _
    $region15: #{tpu_custom_call.1} parent=1 // pred_check_branch
      %25 = sbr.rel (0) target = $region17
    $region16: #{tpu_custom_call.1} parent=1 // pred_region
      %s26 = sadd.s32 0, 0
      %p27 = scmp.lt.s32.totalorder %s26, 0
      %s28 = scalar_select %p27, %s26, 0
      %s29 = smul.addr %s28, 8
      %s30 = scalar_lea.vmem %s3, %s29
      %s31 = sadd.s32 0, 0
    $region17: #{tpu_custom_call.1} parent=1 // pred_fallthru
      _
    // Predicated region
    $region18: #{tpu_custom_call.1} parent=1 // pred_check
      _
    $region19: #{tpu_custom_call.1} parent=1 // pred_check_branch
      %33 = sbr.rel (0) target = $region21
    $region20: #{tpu_custom_call.1} parent=1 // pred_region
      %s34 = sadd.s32 0, 0
      %p35 = scmp.lt.s32.totalorder %s34, 0
      %s36 = scalar_select %p35, %s34, 0
      %s37 = smul.addr %s36, 8
      %s38 = scalar_lea.vmem %s4, %s37
      %s39 = sadd.s32 0, 0
    $region21: #{tpu_custom_call.1} parent=1 // pred_fallthru
      _
    %s40 = sadd.s32 0, 0
    %p41 = scmp.lt.s32.totalorder %s40, 0
    %s42 = scalar_select %p41, %s40, 0
    %s43 = smul.addr %s42, 4
    %s44 = smul.addr %s43, 8
    %s45 = scalar_lea.vmem %s0, %s44
    %s46 = sadd.s32 0, 0
    %p47 = scmp.lt.s32.totalorder %s46, 0
    %s48 = scalar_select %p47, %s46, 0
    %s49 = smul.addr %s48, 8
    %s50 = scalar_lea.vmem %s3, %s49
    %s51 = sadd.s32 0, 0
    %p52 = scmp.lt.s32.totalorder %s51, 0
    %s53 = scalar_select %p52, %s51, 0
    %s54 = smul.addr %s53, 8
    %s55 = scalar_lea.vmem %s4, %s54
    %s56 = sadd.s32 0, 0
    %p57 = scmp.lt.s32.totalorder %s56, 0
    %s58 = scalar_select %p57, %s56, 0
    %s59 = smul.addr %s58, 4
    %s60 = smul.addr %s59, 8
    %s61 = scalar_lea.vmem %s0, %s60
    %s62 = sadd.s32 0, 0
    %s63 = sadd.s32 0, 0
    %p64 = scmp.lt.s32.totalorder %s63, 0
    %s65 = scalar_select %p64, %s63, 0
    %s66 = smul.addr %s65, 8
    %s67 = scalar_lea.vmem %s3, %s66
    %s68 = sadd.s32 0, 0
    %s69 = sadd.s32 0, 0
    %p70 = scmp.lt.s32.totalorder %s69, 0
    %s71 = scalar_select %p70, %s69, 0
    %s72 = smul.addr %s71, 8
    %s73 = scalar_lea.vmem %s4, %s72
    %s74 = sadd.s32 0, 0
    %p75 = scmp.eq.s32.totalorder 0, 0
    %p76 = scmp.eq.s32.totalorder 0, 0
    %p77 = pnand %p75, %p76
    %p78 = pneg %p77
    // Predicated region
    $region22: #{tpu_custom_call.1} parent=1 // pred_check
      _
    $region23: #{tpu_custom_call.1} parent=1 // pred_check_branch
      %80 = sbr.rel (%p77) target = $region25
    $region24: #{tpu_custom_call.1} parent=1 // pred_region
      %81 = vst [vmem:[#allocation4] sm:$0xff] 0.0
      %vm82 = vcmask 131072
      %83 = vst.msk [vmem:[#allocation3] sm:$0x1] %vm82, 0.0
    $region25: #{tpu_custom_call.1} parent=1 // pred_fallthru
      _
    // Predicated region
    $region26: #{tpu_custom_call.1} parent=1 // pred_check
      %p84 = pneg %p76
    $region27: #{tpu_custom_call.1} parent=1 // pred_check_branch
      %86 = sbr.rel (%p84) target = $region29
    $region28: #{tpu_custom_call.1} parent=1 // pred_region
      %vm87 = vcmask 138240
      %88 = vst.msk [vmem:[#allocation2] sm:$0xff] %vm87, 0.0
    $region29: #{tpu_custom_call.1} parent=1 // pred_fallthru
      _
    %v89 = vld [vmem:[#allocation2] sm:$0xff]
    %v90 = vld [vmem:[%s61] sm:$0xff]
    %v91 = vld [vmem:[%s61 + $0x8] sm:$0xff]
    %v92 = vld [vmem:[%s61 + $0x10] sm:$0xff]
    %v93 = vld [vmem:[%s61 + $0x18] sm:$0xff]
    %v94 = vld [vmem:[%s1] sm:$0xff]
    %v95 = vld [vmem:[%s1 + $0x8] sm:$0xff]
    %v96 = vld [vmem:[%s1 + $0x10] sm:$0xff]
    %v97 = vld [vmem:[%s1 + $0x18] sm:$0xff]
    %v98 = vld [vmem:[%s1 + $0x20] sm:$0xff]
    %v99 = vld [vmem:[%s1 + $0x28] sm:$0xff]
    %v100 = vld [vmem:[%s1 + $0x30] sm:$0xff]
    %v101 = vld [vmem:[%s1 + $0x38] sm:$0xff]
    %v102 = vld [vmem:[%s1 + $0x40] sm:$0xff]
    %v103 = vld [vmem:[%s1 + $0x48] sm:$0xff]
    %v104 = vld [vmem:[%s1 + $0x50] sm:$0xff]
    %v105 = vld [vmem:[%s1 + $0x58] sm:$0xff]
    %v106 = vld [vmem:[%s1 + $0x60] sm:$0xff]
    %v107 = vld [vmem:[%s1 + $0x68] sm:$0xff]
    %v108 = vld [vmem:[%s1 + $0x70] sm:$0xff]
    %v109 = vld [vmem:[%s1 + $0x78] sm:$0xff]
    %v110 = vld [vmem:[%s1 + $0x80] sm:$0xff]
    %v111 = vld [vmem:[%s1 + $0x88] sm:$0xff]
    %v112 = vld [vmem:[%s1 + $0x90] sm:$0xff]
    %v113 = vld [vmem:[%s1 + $0x98] sm:$0xff]
    %v114 = vld [vmem:[%s1 + $0xa0] sm:$0xff]
    %v115 = vld [vmem:[%s1 + $0xa8] sm:$0xff]
    %v116 = vld [vmem:[%s1 + $0xb0] sm:$0xff]
    %v117 = vld [vmem:[%s1 + $0xb8] sm:$0xff]
    %v118 = vld [vmem:[%s1 + $0xc0] sm:$0xff]
    %v119 = vld [vmem:[%s1 + $0xc8] sm:$0xff]
    %v120 = vld [vmem:[%s1 + $0xd0] sm:$0xff]
    %v121 = vld [vmem:[%s1 + $0xd8] sm:$0xff]
    %v122 = vld [vmem:[%s1 + $0xe0] sm:$0xff]
    %v123 = vld [vmem:[%s1 + $0xe8] sm:$0xff]
    %v124 = vld [vmem:[%s1 + $0xf0] sm:$0xff]
    %v125 = vld [vmem:[%s1 + $0xf8] sm:$0xff]
    %v126 = vld [vmem:[%s1 + $0x100] sm:$0xff]
    %v127 = vld [vmem:[%s1 + $0x108] sm:$0xff]
    %v128 = vld [vmem:[%s1 + $0x110] sm:$0xff]
    %v129 = vld [vmem:[%s1 + $0x118] sm:$0xff]
    %v130 = vld [vmem:[%s1 + $0x120] sm:$0xff]
    %v131 = vld [vmem:[%s1 + $0x128] sm:$0xff]
    %v132 = vld [vmem:[%s1 + $0x130] sm:$0xff]
    %v133 = vld [vmem:[%s1 + $0x138] sm:$0xff]
    %v134 = vld [vmem:[%s1 + $0x140] sm:$0xff]
    %v135 = vld [vmem:[%s1 + $0x148] sm:$0xff]
    %v136 = vld [vmem:[%s1 + $0x150] sm:$0xff]
    %v137 = vld [vmem:[%s1 + $0x158] sm:$0xff]
    %v138 = vld [vmem:[%s1 + $0x160] sm:$0xff]
    %v139 = vld [vmem:[%s1 + $0x168] sm:$0xff]
    %v140 = vld [vmem:[%s1 + $0x170] sm:$0xff]
    %v141 = vld [vmem:[%s1 + $0x178] sm:$0xff]
    %v142 = vld [vmem:[%s1 + $0x180] sm:$0xff]
    %v143 = vld [vmem:[%s1 + $0x188] sm:$0xff]
    %v144 = vld [vmem:[%s1 + $0x190] sm:$0xff]
    %v145 = vld [vmem:[%s1 + $0x198] sm:$0xff]
    %v146 = vld [vmem:[%s1 + $0x1a0] sm:$0xff]
    %v147 = vld [vmem:[%s1 + $0x1a8] sm:$0xff]
    %v148 = vld [vmem:[%s1 + $0x1b0] sm:$0xff]
    %v149 = vld [vmem:[%s1 + $0x1b8] sm:$0xff]
    %v150 = vld [vmem:[%s1 + $0x1c0] sm:$0xff]
    %v151 = vld [vmem:[%s1 + $0x1c8] sm:$0xff]
    %v152 = vld [vmem:[%s1 + $0x1d0] sm:$0xff]
    %v153 = vld [vmem:[%s1 + $0x1d8] sm:$0xff]
    %v154 = vld [vmem:[%s1 + $0x1e0] sm:$0xff]
    %v155 = vld [vmem:[%s1 + $0x1e8] sm:$0xff]
    %v156 = vld [vmem:[%s1 + $0x1f0] sm:$0xff]
    %v157 = vld [vmem:[%s1 + $0x1f8] sm:$0xff]
    %158 = vmatprep.subr.mxu0 0.0
    %159 = vmatpush1.msra.mxu0 %v109
    %160 = vmatprep.subr.mxu0 0.0
    %161 = vmatpush1.msra.mxu0 %v108
    %162 = vmatprep.subr.mxu0 0.0
    %163 = vmatpush1.msra.mxu0 %v107
    %164 = vmatprep.subr.mxu0 0.0
    %165 = vmatpush1.msra.mxu0 %v106
    %166 = vmatprep.subr.mxu0 0.0
    %167 = vmatpush1.msra.mxu0 %v105
    %168 = vmatprep.subr.mxu0 0.0
    %169 = vmatpush1.msra.mxu0 %v104
    %170 = vmatprep.subr.mxu0 0.0
    %171 = vmatpush1.msra.mxu0 %v103
    %172 = vmatprep.subr.mxu0 0.0
    %173 = vmatpush1.msra.mxu0 %v102
    %174 = vmatprep.subr.mxu0 0.0
    %175 = vmatpush1.msra.mxu0 %v101
    %176 = vmatprep.subr.mxu0 0.0
    %177 = vmatpush1.msra.mxu0 %v100
    %178 = vmatprep.subr.mxu0 0.0
    %179 = vmatpush1.msra.mxu0 %v99
    %180 = vmatprep.subr.mxu0 0.0
    %181 = vmatpush1.msra.mxu0 %v98
    %182 = vmatprep.subr.mxu0 0.0
    %183 = vmatpush1.msra.mxu0 %v97
    %184 = vmatprep.subr.mxu0 0.0
    %185 = vmatpush1.msra.mxu0 %v96
    %186 = vmatprep.subr.mxu0 0.0
    %187 = vmatpush1.msra.mxu0 %v95
    %188 = vmatprep.subr.mxu0 0.0
    %189 = vmatpush1.msra.mxu0 %v94
    %190 = vmatprep.subr.mxu0 0.0
    %191 = vmatpush2.msra.mxu0 %v125
    %192 = vmatprep.subr.mxu0 0.0
    %193 = vmatpush2.msra.mxu0 %v124
    %194 = vmatprep.subr.mxu0 0.0
    %195 = vmatpush2.msra.mxu0 %v123
    %196 = vmatprep.subr.mxu0 0.0
    %197 = vmatpush2.msra.mxu0 %v122
    %198 = vmatprep.subr.mxu0 0.0
    %199 = vmatpush2.msra.mxu0 %v121
    %200 = vmatprep.subr.mxu0 0.0
    %201 = vmatpush2.msra.mxu0 %v120
    %202 = vmatprep.subr.mxu0 0.0
    %203 = vmatpush2.msra.mxu0 %v119
    %204 = vmatprep.subr.mxu0 0.0
    %205 = vmatpush2.msra.mxu0 %v118
    %206 = vmatprep.subr.mxu0 0.0
    %207 = vmatpush2.msra.mxu0 %v117
    %208 = vmatprep.subr.mxu0 0.0
    %209 = vmatpush2.msra.mxu0 %v116
    %210 = vmatprep.subr.mxu0 0.0
    %211 = vmatpush2.msra.mxu0 %v115
    %212 = vmatprep.subr.mxu0 0.0
    %213 = vmatpush2.msra.mxu0 %v114
    %214 = vmatprep.subr.mxu0 0.0
    %215 = vmatpush2.msra.mxu0 %v113
    %216 = vmatprep.subr.mxu0 0.0
    %217 = vmatpush2.msra.mxu0 %v112
    %218 = vmatprep.subr.mxu0 0.0
    %219 = vmatpush2.msra.mxu0 %v111
    %220 = vmatprep.subr.mxu0 0.0
    %221 = vmatpush2.msra.mxu0 %v110
    %222 = vmatprep.mubr.f32.mxu0 %v91
    %223 = vmatmul.mubr.f32.gmra.mxu0 %v90
    %v224 = vpop.f32.mrf.mxu0
    %v225 = vadd.f32 0.0, %v224
    %v226 = vpop.f32.mrf.mxu0
    %227 = vdwg.mxu0
    %228 = vmatprep.subr.mxu0 0.0
    %229 = vmatpush1.msra.mxu0 %v141
    %230 = vmatprep.subr.mxu0 0.0
    %231 = vmatpush1.msra.mxu0 %v140
    %232 = vmatprep.subr.mxu0 0.0
    %233 = vmatpush1.msra.mxu0 %v139
    %234 = vmatprep.subr.mxu0 0.0
    %235 = vmatpush1.msra.mxu0 %v138
    %236 = vmatprep.subr.mxu0 0.0
    %237 = vmatpush1.msra.mxu0 %v137
    %238 = vmatprep.subr.mxu0 0.0
    %239 = vmatpush1.msra.mxu0 %v136
    %240 = vmatprep.subr.mxu0 0.0
    %241 = vmatpush1.msra.mxu0 %v135
    %242 = vmatprep.subr.mxu0 0.0
    %243 = vmatpush1.msra.mxu0 %v134
    %244 = vmatprep.subr.mxu0 0.0
    %245 = vmatpush1.msra.mxu0 %v133
    %246 = vmatprep.subr.mxu0 0.0
    %247 = vmatpush1.msra.mxu0 %v132
    %248 = vmatprep.subr.mxu0 0.0
    %249 = vmatpush1.msra.mxu0 %v131
    %250 = vmatprep.subr.mxu0 0.0
    %251 = vmatpush1.msra.mxu0 %v130
    %252 = vmatprep.subr.mxu0 0.0
    %253 = vmatpush1.msra.mxu0 %v129
    %254 = vmatprep.subr.mxu0 0.0
    %255 = vmatpush1.msra.mxu0 %v128
    %256 = vmatprep.subr.mxu0 0.0
    %257 = vmatpush1.msra.mxu0 %v127
    %258 = vmatprep.subr.mxu0 0.0
    %259 = vmatpush1.msra.mxu0 %v126
    %260 = vmatprep.subr.mxu0 0.0
    %261 = vmatpush2.msra.mxu0 %v157
    %262 = vmatprep.subr.mxu0 0.0
    %263 = vmatpush2.msra.mxu0 %v156
    %264 = vmatprep.subr.mxu0 0.0
    %265 = vmatpush2.msra.mxu0 %v155
    %266 = vmatprep.subr.mxu0 0.0
    %267 = vmatpush2.msra.mxu0 %v154
    %268 = vmatprep.subr.mxu0 0.0
    %269 = vmatpush2.msra.mxu0 %v153
    %270 = vmatprep.subr.mxu0 0.0
    %271 = vmatpush2.msra.mxu0 %v152
    %272 = vmatprep.subr.mxu0 0.0
    %273 = vmatpush2.msra.mxu0 %v151
    %274 = vmatprep.subr.mxu0 0.0
    %275 = vmatpush2.msra.mxu0 %v150
    %276 = vmatprep.subr.mxu0 0.0
    %277 = vmatpush2.msra.mxu0 %v149
    %278 = vmatprep.subr.mxu0 0.0
    %279 = vmatpush2.msra.mxu0 %v148
    %280 = vmatprep.subr.mxu0 0.0
    %281 = vmatpush2.msra.mxu0 %v147
    %282 = vmatprep.subr.mxu0 0.0
    %283 = vmatpush2.msra.mxu0 %v146
    %284 = vmatprep.subr.mxu0 0.0
    %285 = vmatpush2.msra.mxu0 %v145
    %286 = vmatprep.subr.mxu0 0.0
    %287 = vmatpush2.msra.mxu0 %v144
    %288 = vmatprep.subr.mxu0 0.0
    %289 = vmatpush2.msra.mxu0 %v143
    %290 = vmatprep.subr.mxu0 0.0
    %291 = vmatpush2.msra.mxu0 %v142
    %292 = vmatprep.mubr.f32.mxu0 %v93
    %293 = vmatmul.mubr.f32.gmra.mxu0 %v92
    %v294 = vpop.f32.mrf.mxu0
    %v295 = vadd.f32 %v225, %v294
    %v296 = vpop.f32.mrf.mxu0
    %297 = vdwg.mxu0
    %v298 = vadd.f32 %v89, %v295
    %vm299 = vcmask 138240
    %300 = vst.msk [vmem:[#allocation2] sm:$0xff] %vm299, %v298
    // Predicated region
    $region30: #{tpu_custom_call.1} parent=1 // pred_check
      %p301 = pneg %p76
    $region31: #{tpu_custom_call.1} parent=1 // pred_check_branch
      %303 = sbr.rel (%p301) target = $region33
    $region32: #{tpu_custom_call.1} parent=1 // pred_region
      %v304 = vld [vmem:[#allocation2] sm:$0xff]
      %v305 = vld [vmem:[%s2] sm:$0x1]
      %v307 = vlaneseq
      %v308 = vshrl.u32 %v307, 7
      %v309 = vsub.s32 0, %v308
      %v310 = vrot.slane %v305, %v309
      %v312 = vadd.f32 %v304, %v310
      %v313 = vlaneseq
      %v314 = vand.u32 %v313, 127
      %s315 = sadd.s32 0, 0
      %s316 = smul.u32 %s315, 8
      %v317 = vlaneseq
      %v318 = vshrl.u32 %v317, 7
      %v319 = vstv %s316
      %v320 = vadd.s32 %v318, %v319
      %vm321 = vcmp.lt.s32.totalorder %v320, 8
      %v322 = vld [vmem:[%s67] sm:$0xff]
      %v323 = vld [vmem:[%s73] sm:$0xff]
      %325 = vset.pattern.permute.xlu0 0
      %326 = vperm.xlu0 %325, %v322
      %v327 = vpop.permute.xlu0 %326
      %v329 = vsub.f32 %v312, %v327
      %v330 = vld [vmem:[#allocation3] sm:$0x1]
      %vm331 = vcmp.eq.s32.totalorder %v314, 0
      %v332 = vsel %vm321, 1, 0
      %vm333 = vcmp.eq.s32.totalorder %v332, 1
      %vm334 = vmand %vm333, %vm331
      %v335 = vmul.f32 %v329, %v329
      %v336 = vsel %vm334, %v335, 0.0
      %v337 = vsel %vm299, %v336, 0.0
      %v338 = vrot.slane %v337, 4
      %v339 = vadd.f32 %v337, %v338
      %v340 = vrot.slane %v339, 2
      %v341 = vadd.f32 %v339, %v340
      %v342 = vrot.slane %v341, 1
      %v343 = vadd.f32 %v341, %v342
      %v344 = vadd.f32 %v330, %v343
      %vm345 = vcmask 131072
      %346 = vst.msk [vmem:[#allocation3] sm:$0x1] %vm345, %v344
      %vm347 = vcmp.ge.s32.totalorder %v314, 1
      %v348 = vsel %vm347, %v312, -inf
      %v349 = vsel %vm299, %v348, -inf
      %350 = vmax.xlane.f32.xlu0 %v349
      %v351 = vpop.xlane.xlu0 %350
      %v352 = vsub.f32 %v348, %v351
      %v353 = vmul.f32 %v352, 1.442695
      %v354 = vpow.pop %v353
      %v355 = vsel %vm299, %v354, 0.0
      %356 = vadd.xlane.f32.xlu0 %v355
      %v357 = vpop.xlane.xlu0 %356
      %v358 = vlog2.pop %v357
      %v359 = vmul.f32 %v358, 0.6931472
      %v360 = vadd.f32 %v351, %v359
      %v361 = vadd.s32 %v323, 1
      %362 = vset.pattern.permute.xlu0 0
      %363 = vperm.xlu0 %362, %v361
      %v364 = vpop.permute.xlu0 %363
      %vm365 = vcmp.eq.s32.totalorder %v314, %v364
      %v366 = vsel %vm365, %v312, 0.0
      %v367 = vsel %vm299, %v366, 0.0
      %368 = vadd.xlane.f32.xlu0 %v367
      %v369 = vpop.xlane.xlu0 %368
      %v370 = vsub.f32 %v360, %v369
      %v371 = vsel %vm321, %v370, 0.0
      %v372 = vrot.slane %v371, 4
      %v373 = vadd.f32 %v371, %v372
      %v374 = vrot.slane %v373, 2
      %v375 = vadd.f32 %v373, %v374
      %v376 = vrot.slane %v375, 1
      %v377 = vadd.f32 %v375, %v376
      %vm378 = vcmp.eq.f32.partialorder %v369, %v351
      %vm379 = vmand %vm321, %vm378
      %v380 = vsel %vm379, 1.0, 0.0
      %v381 = vrot.slane %v380, 4
      %v382 = vadd.f32 %v380, %v381
      %v383 = vrot.slane %v382, 2
      %v384 = vadd.f32 %v382, %v383
      %v385 = vrot.slane %v384, 1
      %v386 = vadd.f32 %v384, %v385
      %v387 = vld [vmem:[#allocation4] sm:$0xff]
      %vm388 = vcmp.eq.s32.totalorder %v314, 1
      %vm389 = vcmp.eq.s32.totalorder %v314, 2
      %v390 = vsel %vm389, %v386, 0.0
      %v391 = vsel %vm388, %v377, %v390
      %v392 = vadd.f32 %v387, %v391
      %393 = vst [vmem:[#allocation4] sm:$0xff] %v392
    $region33: #{tpu_custom_call.1} parent=1 // pred_fallthru
      _
    // Predicated region
    $region34: #{tpu_custom_call.1} parent=1 // pred_check
      _
    $region35: #{tpu_custom_call.1} parent=1 // pred_check_branch
      %395 = sbr.rel (%p77) target = $region37
    $region36: #{tpu_custom_call.1} parent=1 // pred_region
      %v396 = vld [vmem:[#allocation3] sm:$0x1]
      %vm397 = vcmask 131072
      %v398 = vsel %vm397, %v396, 0.0
      %399 = vadd.xlane.f32.xlu0 %v398
      %v400 = vpop.xlane.xlu0 %399
      %v401 = vlaneseq
      %v402 = vand.u32 %v401, 127
      %v403 = vld [vmem:[#allocation4] sm:$0xff]
      %vm404 = vcmp.eq.s32.totalorder %v402, 0
      %v405 = vlaneseq
      %v406 = vshrl.u32 %v405, 7
      %v407 = vsub.s32 0, %v406
      %v408 = vrot.slane %v400, %v407
      %v409 = vsel %vm404, %v408, 0.0
      %v410 = vadd.f32 %v403, %v409
      %411 = vst [vmem:[#allocation4] sm:$0xff] %v410
    $region37: #{tpu_custom_call.1} parent=1 // pred_fallthru
      _
    // Predicated region
    $region38: #{tpu_custom_call.1} parent=1 // pred_check
      _
    $region39: #{tpu_custom_call.1} parent=1 // pred_check_branch
      %413 = sbr.rel (0) target = $region41
    $region40: #{tpu_custom_call.1} parent=1 // pred_region
      %s415 = ssub.s32 128, 128
      %416 = vsyncadd [#allocation5], %s415
      %s418 = sshll.u32 [#allocation4], 4
      %s419 = int_to_ptr.vmem [resolvable:$true] %s418
      %421 = dma.vmem_to_hbm [thread:$0]  %s419, 128, %s5, [#allocation5]
    $region41: #{tpu_custom_call.1} parent=1 // pred_fallthru
      _
    // Predicated region
    $region42: #{tpu_custom_call.1} parent=1 // pred_check
      _
    $region43: #{tpu_custom_call.1} parent=1 // pred_check_branch
      %423 = sbr.rel (0) target = $region45
    $region44: #{tpu_custom_call.1} parent=1 // pred_region
      %424 = dma.done [#allocation5], 128
    $region45: #{tpu_custom_call.1} parent=1 // pred_fallthru
      _
    %425 = vsyncpa [#allocation5], 1

</llo_original>
